<compile_context>
chip_gen: v7x
topology: tpu7x:2x2x1
jax: 0.10.0
libtpu: 0.0.40
codegen_flags: <defaults>
</compile_context>

<pallas_src>
import jax
import jax.numpy as jnp
from jax.experimental import pallas as pl
from jax.experimental.pallas import tpu as pltpu

CL_VALUE = 0.003


def _fooling_noise_kernel(noise_ref, x_ref, o_ref):
    # noise_ref: (1, rows, lane) f32; x_ref: (bt, rows, lane) f32/bf16; o_ref: f32.
    n = jnp.clip(noise_ref[...], -CL_VALUE, CL_VALUE)
    x = x_ref[...].astype(jnp.float32)
    o_ref[...] = jnp.clip(n + x, 0.0, 1.0)


def fooling_noise_forward(x, noise):
    """clamp(clamp(noise, +/-0.003) + x, 0, 1) -> float32.  x:(N,C,H,W), noise:(1,C,H,W)."""
    N, C, H, W = x.shape
    assert noise.shape == (1, C, H, W)
    L = C * H * W

    noise_f32 = noise.astype(jnp.float32)

    # Robustness fallback for shapes that don't lane-align (C*H*W % 128 != 0).
    if N == 0 or L % 128 != 0:
        return jnp.clip(
            jnp.clip(noise_f32, -CL_VALUE, CL_VALUE) + x.astype(jnp.float32), 0.0, 1.0
        )

    # x may stay bf16 (halves input HBM traffic); anything else goes to f32.
    x_k = x if x.dtype in (jnp.float32, jnp.bfloat16) else x.astype(jnp.float32)

    R128 = L // 128
    use_rowsplit = (N < 4) and (R128 >= 64)

    if use_rowsplit:
        # ---- Small-N path: split image rows across a second (outer) grid axis.
        lane = 128
        R = R128
        target_chunks = max(2, 8 // N)                       # N=1 -> 8, N=2 -> 4, N=3 -> 2
        r_tile = min(R, ((pl.cdiv(R, target_chunks) + 15) // 16) * 16)
        grid = (pl.cdiv(R, r_tile), N)                       # rows outer -> noise stays resident across batch
        in_specs = [
            pl.BlockSpec((1, r_tile, lane), lambda r, b: (0, r, 0)),   # noise
            pl.BlockSpec((1, r_tile, lane), lambda r, b: (b, r, 0)),   # x
        ]
        out_specs = pl.BlockSpec((1, r_tile, lane), lambda r, b: (b, r, 0))
        dims = ("parallel", "parallel")
    else:
        # ---- Large-N path: widest lane extent, several images per step.
        lane = next(c for c in (1024, 512, 256, 128) if L % c == 0)
        R = L // lane
        b_tile = min(8, max(1, N // 2))                      # >= 2 grid steps whenever N >= 2
        grid = (pl.cdiv(N, b_tile),)
        in_specs = [
            # constant block index -> VMEM-resident; one buffer is enough
            pl.BlockSpec((1, R, lane), lambda i: (0, 0, 0),
                         pipeline_mode=pl.Buffered(1)),
            pl.BlockSpec((b_tile, R, lane), lambda i: (i, 0, 0)),
        ]
        out_specs = pl.BlockSpec((b_tile, R, lane), lambda i: (i, 0, 0))
        dims = ("parallel",)

    x_r = x_k.reshape(N, R, lane)
    n_r = noise_f32.reshape(1, R, lane)

    cost = pl.CostEstimate(
        flops=int(5 * N * L),                                 # clamp + add + clamp per element
        transcendentals=0,
        bytes_accessed=int(N * L * x_r.dtype.itemsize + L * 4 + N * L * 4),
    )

    out = pl.pallas_call(
        _fooling_noise_kernel,
        out_shape=jax.ShapeDtypeStruct((N, R, lane), jnp.float32),
        grid_spec=pltpu.PrefetchScalarGridSpec(
            num_scalar_prefetch=0,
            grid=grid,
            in_specs=in_specs,
            out_specs=out_specs,
        ),
        compiler_params=pltpu.CompilerParams(
            dimension_semantics=dims,
            # b_tile=8 double-buffered working set is ~19 MiB: above v5e's
            # 16 MiB default scoped-VMEM limit, comfortably inside every
            # generation's physical VMEM and v6e/v7x defaults.
            vmem_limit_bytes=32 << 20,
        ),
        cost_estimate=cost,
    )(n_r, x_r)

    return out.reshape(N, C, H, W)


if __name__ == "__main__":
    key = jax.random.PRNGKey(0)
    k_noise, k_x, k_x2 = jax.random.split(key, 3)

    # Deterministic parameter init, matching torch.rand(1, 3, 224, 224) / 100
    noise = jax.random.uniform(k_noise, (1, 3, 224, 224), dtype=jnp.float32) / 100.0

    def ref_fn(xv):
        return jnp.clip(jnp.clip(noise, -CL_VALUE, CL_VALUE) + xv, 0.0, 1.0).astype(jnp.float32)

    # Small batch -> exercises the row-split (small-N) path.
    x = jax.random.uniform(k_x, (2, 3, 224, 224), dtype=jnp.float32)
    out = jax.block_until_ready(fooling_noise_forward(x, noise))
    assert out.shape == (2, 3, 224, 224) and out.dtype == jnp.float32
    assert jnp.max(jnp.abs(out - ref_fn(x))) < 1e-6

    # Larger batch -> exercises the batched (large-N) path.
    x8 = jax.random.uniform(k_x2, (8, 3, 224, 224), dtype=jnp.float32)
    out8 = jax.block_until_ready(fooling_noise_forward(x8, noise))
    assert out8.shape == (8, 3, 224, 224) and out8.dtype == jnp.float32
    assert jnp.max(jnp.abs(out8 - ref_fn(x8))) < 1e-6

    print("KERNEL_OK")
</pallas_src>

<mosaic_0001>
module attributes {stable_mosaic.version = 11 : i64} {
  func.func @_fooling_noise_kernel(%arg0: i32, %arg1: i32, %arg2: memref<1x304x128xf32, #tpu.memory_space<vmem>>, %arg3: memref<1x304x128xf32, #tpu.memory_space<vmem>>, %arg4: memref<1x304x128xf32, #tpu.memory_space<vmem>>) attributes {dimension_semantics = [#tpu.dimension_semantics<parallel>, #tpu.dimension_semantics<parallel>], iteration_bounds = array<i64: 4, 2>, scalar_prefetch = 0 : i64, scratch_operands = 0 : i64, tpu.core_type = #tpu.core_type<tc>, window_params = [{transform_indices = @transform_0, window_bounds = array<i64: 1, 304, 128>}, {transform_indices = @transform_1, window_bounds = array<i64: 1, 304, 128>}, {transform_indices = @transform_2, window_bounds = array<i64: 1, 304, 128>}]} {
    %c0 = arith.constant 0 : index
    %c0_0 = arith.constant 0 : index
    %c0_1 = arith.constant 0 : index
    %0 = vector.load %arg2[%c0, %c0_0, %c0_1] : memref<1x304x128xf32, #tpu.memory_space<vmem>>, vector<1x304x128xf32>
    %cst = arith.constant -3.000000e-03 : f32
    %cst_2 = arith.constant 3.000000e-03 : f32
    %1 = vector.broadcast %cst : f32 to vector<1x304x128xf32>
    %2 = arith.maximumf %1, %0 : vector<1x304x128xf32>
    %3 = vector.broadcast %cst_2 : f32 to vector<1x304x128xf32>
    %4 = arith.minimumf %3, %2 : vector<1x304x128xf32>
    %c0_3 = arith.constant 0 : index
    %c0_4 = arith.constant 0 : index
    %c0_5 = arith.constant 0 : index
    %5 = vector.load %arg3[%c0_3, %c0_4, %c0_5] : memref<1x304x128xf32, #tpu.memory_space<vmem>>, vector<1x304x128xf32>
    %6 = arith.addf %4, %5 : vector<1x304x128xf32>
    %cst_6 = arith.constant 0.000000e+00 : f32
    %cst_7 = arith.constant 1.000000e+00 : f32
    %7 = vector.broadcast %cst_6 : f32 to vector<1x304x128xf32>
    %8 = arith.maximumf %7, %6 : vector<1x304x128xf32>
    %9 = vector.broadcast %cst_7 : f32 to vector<1x304x128xf32>
    %10 = arith.minimumf %9, %8 : vector<1x304x128xf32>
    %c0_8 = arith.constant 0 : index
    %c0_9 = arith.constant 0 : index
    %c0_10 = arith.constant 0 : index
    %11 = vector.load %arg4[%c0_8, %c0_9, %c0_10] : memref<1x304x128xf32, #tpu.memory_space<vmem>>, vector<1x304x128xf32>
    tpu.vector_store %arg4[%c0_8, %c0_9, %c0_10], %10 {strides = array<i32>} : memref<1x304x128xf32, #tpu.memory_space<vmem>>, vector<1x304x128xf32>,
    return
  }
  func.func @transform_0(%arg0: i32, %arg1: i32) -> (i32, i32, i32) {
    %c0_i32 = arith.constant 0 : i32
    %c0_i32_0 = arith.constant 0 : i32
    %c0_i32_1 = arith.constant 0 : i32
    return %c0_i32, %arg0, %c0_i32_0 : i32, i32, i32
  }
  func.func @transform_1(%arg0: i32, %arg1: i32) -> (i32, i32, i32) {
    %c0_i32 = arith.constant 0 : i32
    %c0_i32_0 = arith.constant 0 : i32
    return %arg1, %arg0, %c0_i32 : i32, i32, i32
  }
  func.func @transform_2(%arg0: i32, %arg1: i32) -> (i32, i32, i32) {
    %c0_i32 = arith.constant 0 : i32
    %c0_i32_0 = arith.constant 0 : i32
    return %arg1, %arg0, %c0_i32 : i32, i32, i32
  }
}

</mosaic_0001>

<llo_original>
// kernel: tpu_custom_call.1
$region0: #{tpu_custom_call.1}
  #allocation0 [shape = 'u32[]', space=smem, size = 0x4, offset = 0x4, fixed_abs, tag = 'smem constant byte address 0x4 - core index']
  #allocation1 [shape = 'u32[144,128]{1,0:T(1,128)}', space=vmem, size = 0x12000, scoped, tag = 'internal scratch']
  %s0 = inlined_call_operand.hbm [shape: f32[1,1176,128], index: 0, kind: input, shape index: {}]
  %s1 = inlined_call_operand.hbm [shape: f32[2,1176,128], index: 1, kind: input, shape index: {}]
  %s2 = inlined_call_operand.hbm [shape: f32[2,1176,128], index: 2, kind: output, shape index: {}]
  %s3 = sld [smem:[#allocation0]]
  $region49: #{tpu_custom_call.1} parent=0
    _
  %s5 = ssub.s32 1, %s3
  %s6 = scalar_select 0, %s5, %s3
  $region1: #{tpu_custom_call.1} parent=0
    #allocation2 [shape = 'u8[311296]{0}', space=vmem, size = 0x4c000, scoped, tag = 'input window, operand 0']
    #allocation3 [shape = 's32[2]{0}', space=sflag, size = 0x8, scoped, tag = 'scoped memory for tpu_custom_call.1']
    #allocation4 [shape = 's32[2]{0}', space=sflag, size = 0x8, scoped, tag = 'scoped memory for tpu_custom_call.1']
    #allocation5 [shape = 'u8[311296]{0}', space=vmem, size = 0x4c000, scoped, tag = 'input window, operand 1']
    #allocation6 [shape = 's32[2]{0}', space=sflag, size = 0x8, scoped, tag = 'scoped memory for tpu_custom_call.1']
    #allocation7 [shape = 'u8[311296]{0}', space=vmem, size = 0x4c000, scoped, tag = 'output window, operand 0']
    %7 = vsyncpa [#allocation3], 0
    %s8 = scalar_lea.sflag [#allocation3], 1
    %9 = vsyncpa %s8, 0
    %10 = vsyncpa [#allocation6], 0
    %s11 = scalar_lea.sflag [#allocation6], 1
    %12 = vsyncpa %s11, 0
    %13 = vsyncpa [#allocation4], 0
    %s14 = scalar_lea.sflag [#allocation4], 1
    %15 = vsyncpa %s14, 0
    loop: start=0, step=1, limit=10
    $region2: #{tpu_custom_call.1} parent=1 // loop_pre_header
      _
    $region3: #{tpu_custom_call.1} parent=1 // loop_header
      %s17 = sphi 0, %s21
      %p18 = scmp.ge.s32.totalorder %s17, 10
      %s24 = sphi 0, %s36
      %s25 = sphi 0, %s32
      %s26 = sphi 0, %s24
      %s27 = sphi 0, %s25
      %s28 = sphi 0, %s26
      %s29 = sphi 0, %s27
      %s39 = sphi 0, %s41
      %s42 = sphi 0, %s39
      %s43 = sphi 0, %s42
      %s59 = sphi 0, %s43
      %s67 = sphi 0, %s69
      %s70 = sphi 0, %s67
      %s71 = sphi 0, %s70
      %s87 = sphi 0, %s71
      %s95 = sphi 0, %s97
      %s98 = sphi 0, %s95
      %s99 = sphi 0, %s98
      %s115 = sphi 0, %s99
    $region4: #{tpu_custom_call.1} parent=1 // loop_header_branch
      %20 = sbr.rel (%p18) target = $region8
    $region5: #{tpu_custom_call.1} parent=1 // loop_body
      %s22 = ssub.s32 %s17, 1
      %s23 = ssub.s32 %s17, 2
      %s30 = sadd.s32 1, %s25
      %p31 = scmp.ge.s32.totalorder %s30, 2
      %s32 = scalar_select %p31, 0, %s30
      %s33 = sadd.s32 1, %s24
      %s34 = scalar_select %p31, %s33, %s24
      %p35 = scmp.ge.s32.totalorder %s34, 4
      %s36 = scalar_select %p35, 0, %s34
      %s37 = ssub.s32 %s24, %s36
      %p38 = scmp.eq.s32.totalorder %s37, 0
      %s40 = sadd.s32 %s39, 1
      %s41 = scalar_select %p38, %s39, %s40
      %p44 = pneg %p38
      %p45 = scmp.eq.s32.totalorder %s17, 7
      %p46 = por %p44, %p45
      %p47 = scmp.ne.s32.totalorder %s39, %s42
      %p48 = scmp.eq.s32.totalorder %s17, 0
      %p49 = por %p47, %p48
      %p50 = scmp.ne.s32.totalorder %s39, %s42
      %p51 = scmp.eq.s32.totalorder %s22, 7
      %p52 = por %p50, %p51
      %p53 = scmp.ne.s32.totalorder %s42, %s43
      %p54 = scmp.eq.s32.totalorder %s22, 0
      %p55 = por %p53, %p54
      %p56 = scmp.ne.s32.totalorder %s42, %s43
      %p57 = scmp.eq.s32.totalorder %s23, 7
      %p58 = por %p56, %p57
      %p60 = scmp.ne.s32.totalorder %s43, %s59
      %p61 = scmp.eq.s32.totalorder %s23, 0
      %p62 = por %p60, %p61
      %s63 = ssub.s32 %s25, %s32
      %s64 = ssub.s32 %s24, %s36
      %s65 = sor.u32 %s63, %s64
      %p66 = scmp.eq.s32.totalorder %s65, 0
      %s68 = sadd.s32 %s67, 1
      %s69 = scalar_select %p66, %s67, %s68
      %p72 = pneg %p66
      %p73 = scmp.eq.s32.totalorder %s17, 7
      %p74 = por %p72, %p73
      %p75 = scmp.ne.s32.totalorder %s67, %s70
      %p76 = scmp.eq.s32.totalorder %s17, 0
      %p77 = por %p75, %p76
      %p78 = scmp.ne.s32.totalorder %s67, %s70
      %p79 = scmp.eq.s32.totalorder %s22, 7
      %p80 = por %p78, %p79
      %p81 = scmp.ne.s32.totalorder %s70, %s71
      %p82 = scmp.eq.s32.totalorder %s22, 0
      %p83 = por %p81, %p82
      %p84 = scmp.ne.s32.totalorder %s70, %s71
      %p85 = scmp.eq.s32.totalorder %s23, 7
      %p86 = por %p84, %p85
      %p88 = scmp.ne.s32.totalorder %s71, %s87
      %p89 = scmp.eq.s32.totalorder %s23, 0
      %p90 = por %p88, %p89
      %s91 = ssub.s32 %s25, %s32
      %s92 = ssub.s32 %s24, %s36
      %s93 = sor.u32 %s91, %s92
      %p94 = scmp.eq.s32.totalorder %s93, 0
      %s96 = sadd.s32 %s95, 1
      %s97 = scalar_select %p94, %s95, %s96
      %p100 = pneg %p94
      %p101 = scmp.eq.s32.totalorder %s17, 7
      %p102 = por %p100, %p101
      %p103 = scmp.ne.s32.totalorder %s95, %s98
      %p104 = scmp.eq.s32.totalorder %s17, 0
      %p105 = por %p103, %p104
      %p106 = scmp.ne.s32.totalorder %s95, %s98
      %p107 = scmp.eq.s32.totalorder %s22, 7
      %p108 = por %p106, %p107
      %p109 = scmp.ne.s32.totalorder %s98, %s99
      %p110 = scmp.eq.s32.totalorder %s22, 0
      %p111 = por %p109, %p110
      %p112 = scmp.ne.s32.totalorder %s98, %s99
      %p113 = scmp.eq.s32.totalorder %s23, 7
      %p114 = por %p112, %p113
      %p116 = scmp.ne.s32.totalorder %s99, %s115
      %p117 = scmp.eq.s32.totalorder %s23, 0
      %p118 = por %p116, %p117
      %p119 = scmp.le.s32.totalorder 1, %s17
      %p120 = scmp.lt.s32.totalorder %s17, 9
      %p121 = pnand %p119, %p120
      %p122 = pneg %p121
      // Predicated region
      $region9: #{tpu_custom_call.1} parent=5 // pred_check
        _
      $region10: #{tpu_custom_call.1} parent=5 // pred_check_branch
        %124 = sbr.rel (%p121) target = $region12
      $region11: #{tpu_custom_call.1} parent=5 // pred_region
        %s125 = ssub.s32 %s17, 1
      $region12: #{tpu_custom_call.1} parent=5 // pred_fallthru
        _
      %p126 = scmp.lt.s32.totalorder %s17, 8
      // Predicated region
      $region13: #{tpu_custom_call.1} parent=5 // pred_check
        %p127 = pneg %p126
      $region14: #{tpu_custom_call.1} parent=5 // pred_check_branch
        %129 = sbr.rel (%p127) target = $region16
      $region15: #{tpu_custom_call.1} parent=5 // pred_region
        // Predicated region
        $region17: #{tpu_custom_call.1} parent=15 // pred_check
          %p130 = pneg %p49
        $region18: #{tpu_custom_call.1} parent=15 // pred_check_branch
          %132 = sbr.rel (%p130) target = $region20
        $region19: #{tpu_custom_call.1} parent=15 // pred_region
          %s133 = sand.u32 %s39, 1
          %s134 = scalar_lea.sflag [#allocation3], %s133
          %s135 = sand.u32 %s39, 1
          %s136 = smul.addr %s135, 304
          %s137 = scalar_lea.vmem [#allocation2], %s136
          %s138 = smul.u32 38, %s24
          %s139 = ssub.s32 147, %s138
          %p140 = scmp.lt.s32.totalorder %s139, 38
          %s141 = scalar_select %p140, %s139, 38
          %s142 = smul.u32 128, %s141
          %s144 = ssub.s32 4864, %s142
          %145 = vsyncadd %s134, %s144
          %p146 = scmp.ne.s32.totalorder 0, %s142
          %s147 = smul.addr %s138, 128
          %s148 = scalar_lea.hbm %s0, %s147
          %s149 = smul.u32 8, %s141
          %s150 = sshll.u32 %s137, 4
          %s151 = int_to_ptr.vmem [resolvable:$true] %s150
          %s152 = sshll.u32 %s149, 4
          %156 = dma.hbm_to_vmem [thread:$0]  (%p146), %s148, %s152, %s151, %s134, 128, 128, 8
        $region20: #{tpu_custom_call.1} parent=15 // pred_fallthru
          _
        // Predicated region
        $region21: #{tpu_custom_call.1} parent=15 // pred_check
          %p157 = pneg %p77
        $region22: #{tpu_custom_call.1} parent=15 // pred_check_branch
          %159 = sbr.rel (%p157) target = $region24
        $region23: #{tpu_custom_call.1} parent=15 // pred_region
          %s160 = sand.u32 %s67, 1
          %s161 = scalar_lea.sflag [#allocation6], %s160
          %s162 = sand.u32 %s67, 1
          %s163 = smul.addr %s162, 304
          %s164 = scalar_lea.vmem [#allocation5], %s163
          %s165 = smul.u32 38, %s24
          %s166 = ssub.s32 147, %s165
          %p167 = scmp.lt.s32.totalorder %s166, 38
          %s168 = scalar_select %p167, %s166, 38
          %s169 = smul.u32 128, %s168
          %s171 = ssub.s32 4864, %s169
          %172 = vsyncadd %s161, %s171
          %p173 = scmp.ne.s32.totalorder 0, %s169
          %s174 = smul.addr %s25, 147
          %s175 = sadd.s32 %s165, %s174
          %s176 = smul.addr %s175, 128
          %s177 = scalar_lea.hbm %s1, %s176
          %s178 = smul.u32 8, %s168
          %s179 = sshll.u32 %s164, 4
          %s180 = int_to_ptr.vmem [resolvable:$true] %s179
          %s181 = sshll.u32 %s178, 4
          %185 = dma.hbm_to_vmem [thread:$0]  (%p173), %s177, %s181, %s180, %s161, 128, 128, 8
        $region24: #{tpu_custom_call.1} parent=15 // pred_fallthru
          _
      $region16: #{tpu_custom_call.1} parent=5 // pred_fallthru
        _
      %p186 = scmp.le.s32.totalorder 1, %s17
      %p187 = scmp.lt.s32.totalorder %s17, 9
      %p188 = pnand %p186, %p187
      %p189 = pneg %p188
      // Predicated region
      $region25: #{tpu_custom_call.1} parent=5 // pred_check
        _
      $region26: #{tpu_custom_call.1} parent=5 // pred_check_branch
        %191 = sbr.rel (%p188) target = $region28
      $region27: #{tpu_custom_call.1} parent=5 // pred_region
        %s192 = ssub.s32 %s17, 1
        %s193 = sand.u32 %s42, 1
        %s194 = scalar_lea.sflag [#allocation3], %s193
        %s195 = sand.u32 %s42, 1
        %s196 = smul.addr %s195, 304
        %s197 = scalar_lea.vmem [#allocation2], %s196
        // Predicated region
        $region29: #{tpu_custom_call.1} parent=27 // pred_check
          %p198 = pneg %p55
        $region30: #{tpu_custom_call.1} parent=27 // pred_check_branch
          %200 = sbr.rel (%p198) target = $region32
        $region31: #{tpu_custom_call.1} parent=27 // pred_region
          %201 = dma.done %s194, 4864
        $region32: #{tpu_custom_call.1} parent=27 // pred_fallthru
          _
        %s202 = sand.u32 %s70, 1
        %s203 = scalar_lea.sflag [#allocation6], %s202
        %s204 = sand.u32 %s70, 1
        %s205 = smul.addr %s204, 304
        %s206 = scalar_lea.vmem [#allocation5], %s205
        // Predicated region
        $region33: #{tpu_custom_call.1} parent=27 // pred_check
          %p207 = pneg %p83
        $region34: #{tpu_custom_call.1} parent=27 // pred_check_branch
          %209 = sbr.rel (%p207) target = $region36
        $region35: #{tpu_custom_call.1} parent=27 // pred_region
          %210 = dma.done %s203, 4864
        $region36: #{tpu_custom_call.1} parent=27 // pred_fallthru
          _
        %s211 = sand.u32 %s42, 1
        %s212 = scalar_lea.sflag [#allocation3], %s211
        %s213 = sand.u32 %s42, 1
        %s214 = smul.addr %s213, 304
        %s215 = scalar_lea.vmem [#allocation2], %s214
        %p216 = pneg %p55
        %p217 = pneg %p52
        %s218 = sand.u32 %s70, 1
        %s219 = scalar_lea.sflag [#allocation6], %s218
        %s220 = sand.u32 %s70, 1
        %s221 = smul.addr %s220, 304
        %s222 = scalar_lea.vmem [#allocation5], %s221
        %p223 = pneg %p83
        %p224 = pneg %p80
        %p225 = pneg %p111
        %p226 = pneg %p108
        %s227 = sand.u32 %s98, 1
        %s228 = scalar_lea.sflag [#allocation4], %s227
        %s229 = sand.u32 %s98, 1
        %s230 = smul.addr %s229, 304
        %s231 = scalar_lea.vmem [#allocation7], %s230
        %s232 = smul.u32 38, %s26
        %s233 = ssub.s32 147, %s232
        %p234 = scmp.lt.s32.totalorder %s233, 38
        %s235 = scalar_select %p234, %s233, 38
        %s236 = smul.u32 128, %s235
        %s237 = smul.u32 38, %s26
        %s238 = ssub.s32 147, %s237
        %p239 = scmp.lt.s32.totalorder %s238, 38
        %s240 = scalar_select %p239, %s238, 38
        %s241 = smul.u32 128, %s240
        %s242 = smul.u32 38, %s26
        %s243 = ssub.s32 147, %s242
        %p244 = scmp.lt.s32.totalorder %s243, 38
        %s245 = scalar_select %p244, %s243, 38
        %s246 = smul.u32 128, %s245
        %v247 = vld [vmem:[%s197] sm:$0xff]
        %v248 = vld [vmem:[%s197 + $0x8] sm:$0xff]
        %v249 = vld [vmem:[%s197 + $0x10] sm:$0xff]
        %v250 = vld [vmem:[%s197 + $0x18] sm:$0xff]
        %v251 = vld [vmem:[%s197 + $0x20] sm:$0xff]
        %v252 = vld [vmem:[%s197 + $0x28] sm:$0xff]
        %v253 = vld [vmem:[%s197 + $0x30] sm:$0xff]
        %v254 = vld [vmem:[%s197 + $0x38] sm:$0xff]
        %v255 = vld [vmem:[%s197 + $0x40] sm:$0xff]
        %v256 = vld [vmem:[%s197 + $0x48] sm:$0xff]
        %v257 = vld [vmem:[%s197 + $0x50] sm:$0xff]
        %v258 = vld [vmem:[%s197 + $0x58] sm:$0xff]
        %v259 = vld [vmem:[%s197 + $0x60] sm:$0xff]
        %v260 = vld [vmem:[%s197 + $0x68] sm:$0xff]
        %v261 = vld [vmem:[%s197 + $0x70] sm:$0xff]
        %v262 = vld [vmem:[%s197 + $0x78] sm:$0xff]
        %v263 = vld [vmem:[%s197 + $0x80] sm:$0xff]
        %v264 = vld [vmem:[%s197 + $0x88] sm:$0xff]
        %v265 = vld [vmem:[%s197 + $0x90] sm:$0xff]
        %v266 = vld [vmem:[%s197 + $0x98] sm:$0xff]
        %v267 = vld [vmem:[%s197 + $0xa0] sm:$0xff]
        %v268 = vld [vmem:[%s197 + $0xa8] sm:$0xff]
        %v269 = vld [vmem:[%s197 + $0xb0] sm:$0xff]
        %v270 = vld [vmem:[%s197 + $0xb8] sm:$0xff]
        %v271 = vld [vmem:[%s197 + $0xc0] sm:$0xff]
        %v272 = vld [vmem:[%s197 + $0xc8] sm:$0xff]
        %v273 = vld [vmem:[%s197 + $0xd0] sm:$0xff]
        %v274 = vld [vmem:[%s197 + $0xd8] sm:$0xff]
        %v275 = vld [vmem:[%s197 + $0xe0] sm:$0xff]
        %v276 = vld [vmem:[%s197 + $0xe8] sm:$0xff]
        %v277 = vld [vmem:[%s197 + $0xf0] sm:$0xff]
        %v278 = vld [vmem:[%s197 + $0xf8] sm:$0xff]
        %v279 = vld [vmem:[%s197 + $0x100] sm:$0xff]
        %v280 = vld [vmem:[%s197 + $0x108] sm:$0xff]
        %v281 = vld [vmem:[%s197 + $0x110] sm:$0xff]
        %v282 = vld [vmem:[%s197 + $0x118] sm:$0xff]
        %v283 = vld [vmem:[%s197 + $0x120] sm:$0xff]
        %v284 = vld [vmem:[%s197 + $0x128] sm:$0xff]
        %v285 = vmax.f32 %v247, -0.003
        %v286 = vmax.f32 %v248, -0.003
        %v287 = vmax.f32 %v249, -0.003
        %v288 = vmax.f32 %v250, -0.003
        %v289 = vmax.f32 %v251, -0.003
        %v290 = vmax.f32 %v252, -0.003
        %v291 = vmax.f32 %v253, -0.003
        %v292 = vmax.f32 %v254, -0.003
        %v293 = vmax.f32 %v255, -0.003
        %v294 = vmax.f32 %v256, -0.003
        %v295 = vmax.f32 %v257, -0.003
        %v296 = vmax.f32 %v258, -0.003
        %v297 = vmax.f32 %v259, -0.003
        %v298 = vmax.f32 %v260, -0.003
        %v299 = vmax.f32 %v261, -0.003
        %v300 = vmax.f32 %v262, -0.003
        %v301 = vmax.f32 %v263, -0.003
        %v302 = vmax.f32 %v264, -0.003
        %v303 = vmax.f32 %v265, -0.003
        %v304 = vmax.f32 %v266, -0.003
        %v305 = vmax.f32 %v267, -0.003
        %v306 = vmax.f32 %v268, -0.003
        %v307 = vmax.f32 %v269, -0.003
        %v308 = vmax.f32 %v270, -0.003
        %v309 = vmax.f32 %v271, -0.003
        %v310 = vmax.f32 %v272, -0.003
        %v311 = vmax.f32 %v273, -0.003
        %v312 = vmax.f32 %v274, -0.003
        %v313 = vmax.f32 %v275, -0.003
        %v314 = vmax.f32 %v276, -0.003
        %v315 = vmax.f32 %v277, -0.003
        %v316 = vmax.f32 %v278, -0.003
        %v317 = vmax.f32 %v279, -0.003
        %v318 = vmax.f32 %v280, -0.003
        %v319 = vmax.f32 %v281, -0.003
        %v320 = vmax.f32 %v282, -0.003
        %v321 = vmax.f32 %v283, -0.003
        %v322 = vmax.f32 %v284, -0.003
        %v323 = vmin.f32 %v285, 0.003
        %v324 = vmin.f32 %v286, 0.003
        %v325 = vmin.f32 %v287, 0.003
        %v326 = vmin.f32 %v288, 0.003
        %v327 = vmin.f32 %v289, 0.003
        %v328 = vmin.f32 %v290, 0.003
        %v329 = vmin.f32 %v291, 0.003
        %v330 = vmin.f32 %v292, 0.003
        %v331 = vmin.f32 %v293, 0.003
        %v332 = vmin.f32 %v294, 0.003
        %v333 = vmin.f32 %v295, 0.003
        %v334 = vmin.f32 %v296, 0.003
        %v335 = vmin.f32 %v297, 0.003
        %v336 = vmin.f32 %v298, 0.003
        %v337 = vmin.f32 %v299, 0.003
        %v338 = vmin.f32 %v300, 0.003
        %v339 = vmin.f32 %v301, 0.003
        %v340 = vmin.f32 %v302, 0.003
        %v341 = vmin.f32 %v303, 0.003
        %v342 = vmin.f32 %v304, 0.003
        %v343 = vmin.f32 %v305, 0.003
        %v344 = vmin.f32 %v306, 0.003
        %v345 = vmin.f32 %v307, 0.003
        %v346 = vmin.f32 %v308, 0.003
        %v347 = vmin.f32 %v309, 0.003
        %v348 = vmin.f32 %v310, 0.003
        %v349 = vmin.f32 %v311, 0.003
        %v350 = vmin.f32 %v312, 0.003
        %v351 = vmin.f32 %v313, 0.003
        %v352 = vmin.f32 %v314, 0.003
        %v353 = vmin.f32 %v315, 0.003
        %v354 = vmin.f32 %v316, 0.003
        %v355 = vmin.f32 %v317, 0.003
        %v356 = vmin.f32 %v318, 0.003
        %v357 = vmin.f32 %v319, 0.003
        %v358 = vmin.f32 %v320, 0.003
        %v359 = vmin.f32 %v321, 0.003
        %v360 = vmin.f32 %v322, 0.003
        %v361 = vld [vmem:[%s206] sm:$0xff]
        %v362 = vld [vmem:[%s206 + $0x8] sm:$0xff]
        %v363 = vld [vmem:[%s206 + $0x10] sm:$0xff]
        %v364 = vld [vmem:[%s206 + $0x18] sm:$0xff]
        %v365 = vld [vmem:[%s206 + $0x20] sm:$0xff]
        %v366 = vld [vmem:[%s206 + $0x28] sm:$0xff]
        %v367 = vld [vmem:[%s206 + $0x30] sm:$0xff]
        %v368 = vld [vmem:[%s206 + $0x38] sm:$0xff]
        %v369 = vld [vmem:[%s206 + $0x40] sm:$0xff]
        %v370 = vld [vmem:[%s206 + $0x48] sm:$0xff]
        %v371 = vld [vmem:[%s206 + $0x50] sm:$0xff]
        %v372 = vld [vmem:[%s206 + $0x58] sm:$0xff]
        %v373 = vld [vmem:[%s206 + $0x60] sm:$0xff]
        %v374 = vld [vmem:[%s206 + $0x68] sm:$0xff]
        %v375 = vld [vmem:[%s206 + $0x70] sm:$0xff]
        %v376 = vld [vmem:[%s206 + $0x78] sm:$0xff]
        %v377 = vld [vmem:[%s206 + $0x80] sm:$0xff]
        %v378 = vld [vmem:[%s206 + $0x88] sm:$0xff]
        %v379 = vld [vmem:[%s206 + $0x90] sm:$0xff]
        %v380 = vld [vmem:[%s206 + $0x98] sm:$0xff]
        %v381 = vld [vmem:[%s206 + $0xa0] sm:$0xff]
        %v382 = vld [vmem:[%s206 + $0xa8] sm:$0xff]
        %v383 = vld [vmem:[%s206 + $0xb0] sm:$0xff]
        %v384 = vld [vmem:[%s206 + $0xb8] sm:$0xff]
        %v385 = vld [vmem:[%s206 + $0xc0] sm:$0xff]
        %v386 = vld [vmem:[%s206 + $0xc8] sm:$0xff]
        %v387 = vld [vmem:[%s206 + $0xd0] sm:$0xff]
        %v388 = vld [vmem:[%s206 + $0xd8] sm:$0xff]
        %v389 = vld [vmem:[%s206 + $0xe0] sm:$0xff]
        %v390 = vld [vmem:[%s206 + $0xe8] sm:$0xff]
        %v391 = vld [vmem:[%s206 + $0xf0] sm:$0xff]
        %v392 = vld [vmem:[%s206 + $0xf8] sm:$0xff]
        %v393 = vld [vmem:[%s206 + $0x100] sm:$0xff]
        %v394 = vld [vmem:[%s206 + $0x108] sm:$0xff]
        %v395 = vld [vmem:[%s206 + $0x110] sm:$0xff]
        %v396 = vld [vmem:[%s206 + $0x118] sm:$0xff]
        %v397 = vld [vmem:[%s206 + $0x120] sm:$0xff]
        %v398 = vld [vmem:[%s206 + $0x128] sm:$0xff]
        %v399 = vadd.f32 %v323, %v361
        %v400 = vadd.f32 %v324, %v362
        %v401 = vadd.f32 %v325, %v363
        %v402 = vadd.f32 %v326, %v364
        %v403 = vadd.f32 %v327, %v365
        %v404 = vadd.f32 %v328, %v366
        %v405 = vadd.f32 %v329, %v367
        %v406 = vadd.f32 %v330, %v368
        %v407 = vadd.f32 %v331, %v369
        %v408 = vadd.f32 %v332, %v370
        %v409 = vadd.f32 %v333, %v371
        %v410 = vadd.f32 %v334, %v372
        %v411 = vadd.f32 %v335, %v373
        %v412 = vadd.f32 %v336, %v374
        %v413 = vadd.f32 %v337, %v375
        %v414 = vadd.f32 %v338, %v376
        %v415 = vadd.f32 %v339, %v377
        %v416 = vadd.f32 %v340, %v378
        %v417 = vadd.f32 %v341, %v379
        %v418 = vadd.f32 %v342, %v380
        %v419 = vadd.f32 %v343, %v381
        %v420 = vadd.f32 %v344, %v382
        %v421 = vadd.f32 %v345, %v383
        %v422 = vadd.f32 %v346, %v384
        %v423 = vadd.f32 %v347, %v385
        %v424 = vadd.f32 %v348, %v386
        %v425 = vadd.f32 %v349, %v387
        %v426 = vadd.f32 %v350, %v388
        %v427 = vadd.f32 %v351, %v389
        %v428 = vadd.f32 %v352, %v390
        %v429 = vadd.f32 %v353, %v391
        %v430 = vadd.f32 %v354, %v392
        %v431 = vadd.f32 %v355, %v393
        %v432 = vadd.f32 %v356, %v394
        %v433 = vadd.f32 %v357, %v395
        %v434 = vadd.f32 %v358, %v396
        %v435 = vadd.f32 %v359, %v397
        %v436 = vadd.f32 %v360, %v398
        %v437 = vmax.f32 %v399, 0.0
        %v438 = vmax.f32 %v400, 0.0
        %v439 = vmax.f32 %v401, 0.0
        %v440 = vmax.f32 %v402, 0.0
        %v441 = vmax.f32 %v403, 0.0
        %v442 = vmax.f32 %v404, 0.0
        %v443 = vmax.f32 %v405, 0.0
        %v444 = vmax.f32 %v406, 0.0
        %v445 = vmax.f32 %v407, 0.0
        %v446 = vmax.f32 %v408, 0.0
        %v447 = vmax.f32 %v409, 0.0
        %v448 = vmax.f32 %v410, 0.0
        %v449 = vmax.f32 %v411, 0.0
        %v450 = vmax.f32 %v412, 0.0
        %v451 = vmax.f32 %v413, 0.0
        %v452 = vmax.f32 %v414, 0.0
        %v453 = vmax.f32 %v415, 0.0
        %v454 = vmax.f32 %v416, 0.0
        %v455 = vmax.f32 %v417, 0.0
        %v456 = vmax.f32 %v418, 0.0
        %v457 = vmax.f32 %v419, 0.0
        %v458 = vmax.f32 %v420, 0.0
        %v459 = vmax.f32 %v421, 0.0
        %v460 = vmax.f32 %v422, 0.0
        %v461 = vmax.f32 %v423, 0.0
        %v462 = vmax.f32 %v424, 0.0
        %v463 = vmax.f32 %v425, 0.0
        %v464 = vmax.f32 %v426, 0.0
        %v465 = vmax.f32 %v427, 0.0
        %v466 = vmax.f32 %v428, 0.0
        %v467 = vmax.f32 %v429, 0.0
        %v468 = vmax.f32 %v430, 0.0
        %v469 = vmax.f32 %v431, 0.0
        %v470 = vmax.f32 %v432, 0.0
        %v471 = vmax.f32 %v433, 0.0
        %v472 = vmax.f32 %v434, 0.0
        %v473 = vmax.f32 %v435, 0.0
        %v474 = vmax.f32 %v436, 0.0
        %v475 = vmin.f32 %v437, 1.0
        %v476 = vmin.f32 %v438, 1.0
        %v477 = vmin.f32 %v439, 1.0
        %v478 = vmin.f32 %v440, 1.0
        %v479 = vmin.f32 %v441, 1.0
        %v480 = vmin.f32 %v442, 1.0
        %v481 = vmin.f32 %v443, 1.0
        %v482 = vmin.f32 %v444, 1.0
        %v483 = vmin.f32 %v445, 1.0
        %v484 = vmin.f32 %v446, 1.0
        %v485 = vmin.f32 %v447, 1.0
        %v486 = vmin.f32 %v448, 1.0
        %v487 = vmin.f32 %v449, 1.0
        %v488 = vmin.f32 %v450, 1.0
        %v489 = vmin.f32 %v451, 1.0
        %v490 = vmin.f32 %v452, 1.0
        %v491 = vmin.f32 %v453, 1.0
        %v492 = vmin.f32 %v454, 1.0
        %v493 = vmin.f32 %v455, 1.0
        %v494 = vmin.f32 %v456, 1.0
        %v495 = vmin.f32 %v457, 1.0
        %v496 = vmin.f32 %v458, 1.0
        %v497 = vmin.f32 %v459, 1.0
        %v498 = vmin.f32 %v460, 1.0
        %v499 = vmin.f32 %v461, 1.0
        %v500 = vmin.f32 %v462, 1.0
        %v501 = vmin.f32 %v463, 1.0
        %v502 = vmin.f32 %v464, 1.0
        %v503 = vmin.f32 %v465, 1.0
        %v504 = vmin.f32 %v466, 1.0
        %v505 = vmin.f32 %v467, 1.0
        %v506 = vmin.f32 %v468, 1.0
        %v507 = vmin.f32 %v469, 1.0
        %v508 = vmin.f32 %v470, 1.0
        %v509 = vmin.f32 %v471, 1.0
        %v510 = vmin.f32 %v472, 1.0
        %v511 = vmin.f32 %v473, 1.0
        %v512 = vmin.f32 %v474, 1.0
        %513 = vst [vmem:[%s231] sm:$0xff] %v475
        %514 = vst [vmem:[%s231 + $0x8] sm:$0xff] %v476
        %515 = vst [vmem:[%s231 + $0x10] sm:$0xff] %v477
        %516 = vst [vmem:[%s231 + $0x18] sm:$0xff] %v478
        %517 = vst [vmem:[%s231 + $0x20] sm:$0xff] %v479
        %518 = vst [vmem:[%s231 + $0x28] sm:$0xff] %v480
        %519 = vst [vmem:[%s231 + $0x30] sm:$0xff] %v481
        %520 = vst [vmem:[%s231 + $0x38] sm:$0xff] %v482
        %521 = vst [vmem:[%s231 + $0x40] sm:$0xff] %v483
        %522 = vst [vmem:[%s231 + $0x48] sm:$0xff] %v484
        %523 = vst [vmem:[%s231 + $0x50] sm:$0xff] %v485
        %524 = vst [vmem:[%s231 + $0x58] sm:$0xff] %v486
        %525 = vst [vmem:[%s231 + $0x60] sm:$0xff] %v487
        %526 = vst [vmem:[%s231 + $0x68] sm:$0xff] %v488
        %527 = vst [vmem:[%s231 + $0x70] sm:$0xff] %v489
        %528 = vst [vmem:[%s231 + $0x78] sm:$0xff] %v490
        %529 = vst [vmem:[%s231 + $0x80] sm:$0xff] %v491
        %530 = vst [vmem:[%s231 + $0x88] sm:$0xff] %v492
        %531 = vst [vmem:[%s231 + $0x90] sm:$0xff] %v493
        %532 = vst [vmem:[%s231 + $0x98] sm:$0xff] %v494
        %533 = vst [vmem:[%s231 + $0xa0] sm:$0xff] %v495
        %534 = vst [vmem:[%s231 + $0xa8] sm:$0xff] %v496
        %535 = vst [vmem:[%s231 + $0xb0] sm:$0xff] %v497
        %536 = vst [vmem:[%s231 + $0xb8] sm:$0xff] %v498
        %537 = vst [vmem:[%s231 + $0xc0] sm:$0xff] %v499
        %538 = vst [vmem:[%s231 + $0xc8] sm:$0xff] %v500
        %539 = vst [vmem:[%s231 + $0xd0] sm:$0xff] %v501
        %540 = vst [vmem:[%s231 + $0xd8] sm:$0xff] %v502
        %541 = vst [vmem:[%s231 + $0xe0] sm:$0xff] %v503
        %542 = vst [vmem:[%s231 + $0xe8] sm:$0xff] %v504
        %543 = vst [vmem:[%s231 + $0xf0] sm:$0xff] %v505
        %544 = vst [vmem:[%s231 + $0xf8] sm:$0xff] %v506
        %545 = vst [vmem:[%s231 + $0x100] sm:$0xff] %v507
        %546 = vst [vmem:[%s231 + $0x108] sm:$0xff] %v508
        %547 = vst [vmem:[%s231 + $0x110] sm:$0xff] %v509
        %548 = vst [vmem:[%s231 + $0x118] sm:$0xff] %v510
        %549 = vst [vmem:[%s231 + $0x120] sm:$0xff] %v511
        %550 = vst [vmem:[%s231 + $0x128] sm:$0xff] %v512
        %s551 = sand.u32 %s98, 1
        %s552 = scalar_lea.sflag [#allocation4], %s551
        %s553 = sand.u32 %s98, 1
        %s554 = smul.addr %s553, 304
        %s555 = scalar_lea.vmem [#allocation7], %s554
        // Predicated region
        $region37: #{tpu_custom_call.1} parent=27 // pred_check
          %p556 = pneg %p108
        $region38: #{tpu_custom_call.1} parent=27 // pred_check_branch
          %558 = sbr.rel (%p556) target = $region40
        $region39: #{tpu_custom_call.1} parent=27 // pred_region
          %s559 = smul.u32 38, %s26
          %s560 = ssub.s32 147, %s559
          %p561 = scmp.lt.s32.totalorder %s560, 38
          %s562 = scalar_select %p561, %s560, 38
          %s563 = smul.u32 128, %s562
          %s565 = ssub.s32 4864, %s563
          %566 = vsyncadd %s552, %s565
          %p567 = scmp.ne.s32.totalorder 0, %s563
          %s568 = smul.addr %s27, 147
          %s569 = sadd.s32 %s559, %s568
          %s570 = smul.addr %s569, 128
          %s571 = scalar_lea.hbm %s2, %s570
          %s572 = smul.u32 8, %s562
          %s573 = sshll.u32 %s555, 4
          %s574 = int_to_ptr.vmem [resolvable:$true] %s573
          %s575 = sshll.u32 %s572, 4
          %579 = dma.vmem_to_hbm [thread:$0]  (%p567), %s574, %s575, %s571, %s552, 128, 128, 8
        $region40: #{tpu_custom_call.1} parent=27 // pred_fallthru
          _
      $region28: #{tpu_custom_call.1} parent=5 // pred_fallthru
        _
      %p580 = scmp.le.s32.totalorder 2, %s17
      // Predicated region
      $region41: #{tpu_custom_call.1} parent=5 // pred_check
        %p581 = pneg %p580
      $region42: #{tpu_custom_call.1} parent=5 // pred_check_branch
        %583 = sbr.rel (%p581) target = $region44
      $region43: #{tpu_custom_call.1} parent=5 // pred_region
        %s584 = ssub.s32 %s17, 2
        // Predicated region
        $region45: #{tpu_custom_call.1} parent=43 // pred_check
          %p585 = pneg %p114
        $region46: #{tpu_custom_call.1} parent=43 // pred_check_branch
          %587 = sbr.rel (%p585) target = $region48
        $region47: #{tpu_custom_call.1} parent=43 // pred_region
          %s588 = sand.u32 %s99, 1
          %s589 = scalar_lea.sflag [#allocation4], %s588
          %s590 = sand.u32 %s99, 1
          %s591 = smul.addr %s590, 304
          %s592 = scalar_lea.vmem [#allocation7], %s591
          %593 = dma.done %s589, 4864
        $region48: #{tpu_custom_call.1} parent=43 // pred_fallthru
          _
      $region44: #{tpu_custom_call.1} parent=5 // pred_fallthru
        _
    $region6: #{tpu_custom_call.1} parent=1 // loop_footer
      %s21 = sadd.s32 1, %s17
    $region7: #{tpu_custom_call.1} parent=1 // loop_footer_branch
      %16 = sbr.rel target = $region3
    $region8: #{tpu_custom_call.1} parent=1 // loop_exit
      _
    %594 = vsyncpa [#allocation3], 1
    %s595 = scalar_lea.sflag [#allocation3], 1
    %596 = vsyncpa %s595, 1
    %597 = vsyncpa [#allocation6], 1
    %s598 = scalar_lea.sflag [#allocation6], 1
    %599 = vsyncpa %s598, 1
    %600 = vsyncpa [#allocation4], 1
    %s601 = scalar_lea.sflag [#allocation4], 1
    %602 = vsyncpa %s601, 1

</llo_original>
